<compile_context>
chip_gen: v7x
topology: tpu7x:2x2x1
jax: 0.10.0
libtpu: 0.0.40
codegen_flags: <defaults>
</compile_context>

<pallas_src>
import jax
import jax.numpy as jnp
from jax import lax
from jax.experimental import pallas as pl
from jax.experimental.pallas import tpu as pltpu


_ACTIVATIONS = {
    "relu": lambda x: jnp.maximum(x, 0.0),
    "sigmoid": jax.nn.sigmoid,
    "tanh": jnp.tanh,
    None: lambda x: x,
}


def _round_up(x, m):
    return (x + m - 1) // m * m


# --------------------------------------------------------------------------- kernel
def _make_kernel(n_extra_layers, activation, compute_dtype, hb, h0p):
    act = _ACTIVATIONS[activation]

    def kernel(ax_ref, w0_ref, b0_ref, *rest):
        # ax_ref : (K_pad, tile_N)          compute_dtype   (N on lanes)
        # w0_ref : (1, hb*H0p, K_pad)       compute_dtype
        # b0_ref : (1, hb*H0p, 1)           f32
        # rest   : (w1, b1, ..., wL, bL, out_ref)
        #   wl : (1, hb, d_out_p, d_in_p)   compute_dtype
        #   bl : (1, hb, d_out_p, 1)        f32
        # out_ref: (1, hb*d_last_p, tile_N) f32
        out_ref = rest[-1]
        wb = rest[:-1]
        tile_n = ax_ref.shape[-1]

        # Layer 0: lag contraction folded into K; single MXU matmul, f32 accumulate.
        x = jnp.dot(w0_ref[0], ax_ref[...], preferred_element_type=jnp.float32)
        x = x + b0_ref[0]                                   # broadcast over lanes
        x = x.reshape(hb, h0p, tile_n)                      # sublane-aligned split (H0p % 8 == 0)

        # Conv1d(k=1) layers: per-head batched contraction (no block-diag zero MACs).
        for l in range(n_extra_layers):
            w = wb[2 * l][0]                                # (hb, d_out_p, d_in_p)
            b = wb[2 * l + 1][0]                            # (hb, d_out_p, 1)
            x = act(x)                                      # f32 activations (v5e-safe)
            x = lax.dot_general(
                w, x.astype(compute_dtype),
                dimension_numbers=(((2,), (1,)), ((0,), (0,))),
                preferred_element_type=jnp.float32)         # (hb, d_out_p, tile_N)
            x = x + b

        out_ref[0] = x.reshape(hb * x.shape[1], tile_n).astype(out_ref.dtype)

    return kernel


# ------------------------------------------------------------------- param packing
def pack_mlp_params(w0_all, b0_all, layer_params_all, hb=None,
                    compute_dtype=jnp.bfloat16):
    """Repack (and pad) weights ONCE; reuse across forward calls.

    w0_all: (n_heads, H0, num_series, lag)    b0_all: (n_heads, H0)
    layer_params_all: list of (w, b) with w (n_heads, d_out, d_in, 1), b (n_heads, d_out)
    """
    n_heads, H0 = b0_all.shape
    _, _, P, lag = w0_all.shape
    K = lag * P
    kmult = 16 if jnp.dtype(compute_dtype).itemsize == 2 else 8
    K_pad = _round_up(K, kmult)
    H0p = _round_up(H0, 8)

    if hb is None:
        # >=2 groups whenever there is more than one head (keeps both v7x TCs busy),
        # capped so per-group weight/activation blocks stay small.
        hb = max(1, min(16, -(-n_heads // 2)))
    n_groups = -(-n_heads // hb)
    n_heads_pad = n_groups * hb          # dummy (all-zero) heads if it doesn't divide

    # Layer 0 effective weight: w0_eff[h, c, j*P + p] = W0[h, c, p, lag-1-j]
    w0_eff = jnp.transpose(w0_all[:, :, :, ::-1], (0, 1, 3, 2)).reshape(n_heads, H0, K)
    w0_p = jnp.zeros((n_heads_pad, H0p, K_pad), compute_dtype)
    w0_p = w0_p.at[:n_heads, :H0, :K].set(w0_eff.astype(compute_dtype))
    w0_grp = w0_p.reshape(n_groups, hb * H0p, K_pad)

    b0_p = jnp.zeros((n_heads_pad, H0p), jnp.float32)
    b0_p = b0_p.at[:n_heads, :H0].set(b0_all.astype(jnp.float32))
    b0_grp = b0_p.reshape(n_groups, hb * H0p, 1)

    layers = []
    d_prev, d_prev_p = H0, H0p
    for (w, b) in layer_params_all:
        d_out, d_in = w.shape[1], w.shape[2]
        assert d_in == d_prev, (d_in, d_prev)
        d_out_p = _round_up(d_out, 8)
        w_p = jnp.zeros((n_heads_pad, d_out_p, d_prev_p), compute_dtype)
        w_p = w_p.at[:n_heads, :d_out, :d_in].set(w[..., 0].astype(compute_dtype))
        b_p = jnp.zeros((n_heads_pad, d_out_p), jnp.float32)
        b_p = b_p.at[:n_heads, :d_out].set(b.astype(jnp.float32))
        layers.append((w_p.reshape(n_groups, hb, d_out_p, d_prev_p),
                       b_p.reshape(n_groups, hb, d_out_p, 1)))
        d_prev, d_prev_p = d_out, d_out_p

    meta = dict(n_heads=n_heads, hb=hb, n_groups=n_groups, H0p=H0p, K=K, K_pad=K_pad,
                d_last=d_prev, d_last_p=d_prev_p, compute_dtype=compute_dtype)
    return {"meta": meta, "w0": w0_grp, "b0": b0_grp, "layers": layers}


# ------------------------------------------------------------------------ forward
def mlp_forward_packed(AX, packed, activation="relu", tile_n=256):
    """AX: (lag, N, num_series).  Returns (n_heads, 1, N, d_last)."""
    meta = packed["meta"]
    lag, N, P = AX.shape
    K, K_pad = meta["K"], meta["K_pad"]
    assert lag * P == K, (lag, P, K)
    cdt = meta["compute_dtype"]
    hb, n_groups = meta["hb"], meta["n_groups"]
    H0p, d_last, d_last_p = meta["H0p"], meta["d_last"], meta["d_last_p"]

    tile_n = min(tile_n, _round_up(N, 128))          # lane-dense (>=128), 256 default
    N_pad = _round_up(N, tile_n)
    n_tiles = N_pad // tile_n

    # AX (lag, N, P) -> (K, N): fold the lag sum into the matmul K dim; pad K and N.
    ax_t = jnp.transpose(AX, (0, 2, 1)).reshape(K, N)
    ax_pad = jnp.zeros((K_pad, N_pad), cdt).at[:K, :N].set(ax_t.astype(cdt))

    inputs = [ax_pad, packed["w0"], packed["b0"]]
    in_specs = [
        pl.BlockSpec((K_pad, tile_n), lambda g, n: (0, n)),
        pl.BlockSpec((1, hb * H0p, K_pad), lambda g, n: (g, 0, 0)),
        pl.BlockSpec((1, hb * H0p, 1), lambda g, n: (g, 0, 0)),
    ]
    for (w_grp, b_grp) in packed["layers"]:
        inputs += [w_grp, b_grp]
        in_specs += [
            pl.BlockSpec((1,) + w_grp.shape[1:], lambda g, n: (g, 0, 0, 0)),
            pl.BlockSpec((1,) + b_grp.shape[1:], lambda g, n: (g, 0, 0, 0)),
        ]

    kernel = _make_kernel(len(packed["layers"]), activation, cdt, hb, H0p)

    out = pl.pallas_call(
        kernel,
        out_shape=jax.ShapeDtypeStruct((n_groups, hb * d_last_p, N_pad), jnp.float32),
        grid=(n_groups, n_tiles),
        in_specs=in_specs,
        out_specs=pl.BlockSpec((1, hb * d_last_p, tile_n), lambda g, n: (g, 0, n)),
        compiler_params=pltpu.CompilerParams(
            dimension_semantics=("parallel", "parallel"),   # groups x N-tiles shard TCs
            vmem_limit_bytes=32 * 1024 * 1024,
        ),
    )(*inputs)

    # (n_groups, hb*d_last_p, N_pad) -> (n_heads, 1, N, d_last); drop pad heads/rows/cols.
    out = out.reshape(n_groups * hb, d_last_p, N_pad)[:meta["n_heads"], :d_last, :N]
    return jnp.transpose(out, (0, 2, 1))[:, None]


def mlp_forward_pallas_batched(AX, w0_all, b0_all, layer_params_all,
                               activation="relu", compute_dtype=jnp.bfloat16,
                               hb=None, tile_n=256):
    """Convenience wrapper: packs params and runs the forward pass in one call.
    In a training/eval loop, call pack_mlp_params once and mlp_forward_packed per step."""
    packed = pack_mlp_params(w0_all, b0_all, layer_params_all, hb=hb,
                             compute_dtype=compute_dtype)
    return mlp_forward_packed(AX, packed, activation=activation, tile_n=tile_n)


def mlp_forward_pallas(AX, w0, b0, layer_params, activation="relu",
                       compute_dtype=jnp.float32):
    """Single-head forward, identical semantics to the torch module: returns (1, N, 1)."""
    out = mlp_forward_pallas_batched(
        AX, w0[None], b0[None], [(w[None], b[None]) for (w, b) in layer_params],
        activation=activation, compute_dtype=compute_dtype)
    return out[0]


# ----------------------------------------------------------------------- reference
def mlp_forward_ref(AX, w0, b0, layer_params, activation="relu"):
    act = _ACTIVATIONS[activation]
    lag = AX.shape[0]
    ret = 0.0
    for i in range(lag):
        ret = ret + AX[i] @ w0[:, :, lag - 1 - i].T
    ret = ret + b0
    for (w, b) in layer_params:
        ret = act(ret)
        ret = ret @ w[:, :, 0].T + b
    return ret[None, :, :]


if __name__ == "__main__":
    num_series = 4
    lag = 5
    hidden = [32, 32]
    N = 16
    n_heads = 4
    activation = "relu"

    key = jax.random.PRNGKey(0)
    k_ax, k_w = jax.random.split(key)
    AX = jax.random.normal(k_ax, (lag, N, num_series), dtype=jnp.float32)

    dims = list(zip(hidden, hidden[1:] + [1]))
    keys = jax.random.split(k_w, 2 + 2 * len(dims))
    w0_all = 0.1 * jax.random.normal(keys[0], (n_heads, hidden[0], num_series, lag), jnp.float32)
    b0_all = 0.1 * jax.random.normal(keys[1], (n_heads, hidden[0]), jnp.float32)
    layer_params_all = []
    ki = 2
    for d_in, d_out in dims:
        w = 0.1 * jax.random.normal(keys[ki], (n_heads, d_out, d_in, 1), jnp.float32)
        b = 0.1 * jax.random.normal(keys[ki + 1], (n_heads, d_out), jnp.float32)
        ki += 2
        layer_params_all.append((w, b))

    # --- f32 path: exact check against the reference -------------------------
    packed_f32 = pack_mlp_params(w0_all, b0_all, layer_params_all,
                                 compute_dtype=jnp.float32)
    out_f32 = jax.block_until_ready(mlp_forward_packed(AX, packed_f32, activation))
    assert out_f32.shape == (n_heads, 1, N, 1), out_f32.shape
    for h in range(n_heads):
        ref = mlp_forward_ref(AX, w0_all[h], b0_all[h],
                              [(w[h], b[h]) for (w, b) in layer_params_all], activation)
        err = float(jnp.max(jnp.abs(out_f32[h] - ref)))
        assert jnp.allclose(out_f32[h], ref, atol=1e-4, rtol=1e-4), (h, err)

    # --- bf16 default path (MXU fast path, f32 accumulation) -----------------
    # NOTE: AX and weights are both bf16; precision loss grows with lag*num_series
    # (documented tolerance).  Pass compute_dtype=jnp.float32 for exactness.
    packed_bf16 = pack_mlp_params(w0_all, b0_all, layer_params_all,
                                  compute_dtype=jnp.bfloat16)
    out_bf16 = jax.block_until_ready(mlp_forward_packed(AX, packed_bf16, activation))
    assert float(jnp.max(jnp.abs(out_bf16 - out_f32))) < 5e-2, \
        float(jnp.max(jnp.abs(out_bf16 - out_f32)))

    # --- single-head API (module-identical output shape) ---------------------
    out1 = jax.block_until_ready(
        mlp_forward_pallas(AX, w0_all[0], b0_all[0],
                           [(w[0], b[0]) for (w, b) in layer_params_all], activation))
    ref0 = mlp_forward_ref(AX, w0_all[0], b0_all[0],
                           [(w[0], b[0]) for (w, b) in layer_params_all], activation)
    assert out1.shape == (1, N, 1), out1.shape
    assert jnp.allclose(out1, ref0, atol=1e-4, rtol=1e-4), \
        float(jnp.max(jnp.abs(out1 - ref0)))

    # --- larger / non-divisible config: exercises N tiling + head padding ----
    N2, n_heads2 = 300, 3
    k2 = jax.random.PRNGKey(1)
    k_ax2, k_w2 = jax.random.split(k2)
    AX2 = jax.random.normal(k_ax2, (lag, N2, num_series), jnp.float32)
    keys2 = jax.random.split(k_w2, 2 + 2 * len(dims))
    w0_2 = 0.1 * jax.random.normal(keys2[0], (n_heads2, hidden[0], num_series, lag), jnp.float32)
    b0_2 = 0.1 * jax.random.normal(keys2[1], (n_heads2, hidden[0]), jnp.float32)
    lp2 = []
    ki = 2
    for d_in, d_out in dims:
        w = 0.1 * jax.random.normal(keys2[ki], (n_heads2, d_out, d_in, 1), jnp.float32)
        b = 0.1 * jax.random.normal(keys2[ki + 1], (n_heads2, d_out), jnp.float32)
        ki += 2
        lp2.append((w, b))
    out2 = jax.block_until_ready(
        mlp_forward_pallas_batched(AX2, w0_2, b0_2, lp2, activation,
                                   compute_dtype=jnp.float32))
    assert out2.shape == (n_heads2, 1, N2, 1), out2.shape
    for h in range(n_heads2):
        ref = mlp_forward_ref(AX2, w0_2[h], b0_2[h],
                              [(w[h], b[h]) for (w, b) in lp2], activation)
        err = float(jnp.max(jnp.abs(out2[h] - ref)))
        assert jnp.allclose(out2[h], ref, atol=1e-4, rtol=1e-4), (h, err)

    print("KERNEL_OK")
</pallas_src>

<mosaic_0001>
module attributes {stable_mosaic.version = 11 : i64} {
  func.func @kernel(%arg0: i32, %arg1: i32, %arg2: memref<24x128xf32, #tpu.memory_space<vmem>>, %arg3: memref<1x64x24xf32, #tpu.memory_space<vmem>>, %arg4: memref<1x64x1xf32, #tpu.memory_space<vmem>>, %arg5: memref<1x2x32x32xf32, #tpu.memory_space<vmem>>, %arg6: memref<1x2x32x1xf32, #tpu.memory_space<vmem>>, %arg7: memref<1x2x8x32xf32, #tpu.memory_space<vmem>>, %arg8: memref<1x2x8x1xf32, #tpu.memory_space<vmem>>, %arg9: memref<1x16x128xf32, #tpu.memory_space<vmem>>) attributes {dimension_semantics = [#tpu.dimension_semantics<parallel>, #tpu.dimension_semantics<parallel>], iteration_bounds = array<i64: 2, 1>, scalar_prefetch = 0 : i64, scratch_operands = 0 : i64, tpu.core_type = #tpu.core_type<tc>, window_params = [{transform_indices = @transform_0, window_bounds = array<i64: 24, 128>}, {transform_indices = @transform_1, window_bounds = array<i64: 1, 64, 24>}, {transform_indices = @transform_2, window_bounds = array<i64: 1, 64, 1>}, {transform_indices = @transform_3, window_bounds = array<i64: 1, 2, 32, 32>}, {transform_indices = @transform_4, window_bounds = array<i64: 1, 2, 32, 1>}, {transform_indices = @transform_5, window_bounds = array<i64: 1, 2, 8, 32>}, {transform_indices = @transform_6, window_bounds = array<i64: 1, 2, 8, 1>}, {transform_indices = @transform_7, window_bounds = array<i64: 1, 16, 128>}]} {
    %c0 = arith.constant 0 : index
    %c0_0 = arith.constant 0 : index
    %c0_1 = arith.constant 0 : index
    %0 = vector.load %arg3[%c0, %c0_0, %c0_1] : memref<1x64x24xf32, #tpu.memory_space<vmem>>, vector<1x64x24xf32>
    %1 = vector.shape_cast %0 : vector<1x64x24xf32> to vector<64x24xf32>
    %c0_2 = arith.constant 0 : index
    %c0_3 = arith.constant 0 : index
    %2 = vector.load %arg2[%c0_2, %c0_3] : memref<24x128xf32, #tpu.memory_space<vmem>>, vector<24x128xf32>
    %cst = arith.constant dense<0.000000e+00> : vector<64x128xf32>
    %3 = tpu.matmul %1, %2, %cst {dimension_numbers = #tpu.dot_dimension_numbers<[1], [0], [0], [1], [0, 0, 1, 1], [], []>} : vector<64x24xf32>, vector<24x128xf32>, vector<64x128xf32> -> vector<64x128xf32>
    %c0_4 = arith.constant 0 : index
    %c0_5 = arith.constant 0 : index
    %c0_6 = arith.constant 0 : index
    %4 = vector.load %arg4[%c0_4, %c0_5, %c0_6] : memref<1x64x1xf32, #tpu.memory_space<vmem>>, vector<1x64x1xf32>
    %5 = vector.shape_cast %4 : vector<1x64x1xf32> to vector<64x1xf32>
    %6 = vector.broadcast %5 : vector<64x1xf32> to vector<64x128xf32>
    %7 = arith.addf %3, %6 : vector<64x128xf32>
    %8 = vector.shape_cast %7 : vector<64x128xf32> to vector<2x32x128xf32>
    %c0_7 = arith.constant 0 : index
    %c0_8 = arith.constant 0 : index
    %c0_9 = arith.constant 0 : index
    %c0_10 = arith.constant 0 : index
    %9 = vector.load %arg5[%c0_7, %c0_8, %c0_9, %c0_10] : memref<1x2x32x32xf32, #tpu.memory_space<vmem>>, vector<1x2x32x32xf32>
    %10 = vector.shape_cast %9 : vector<1x2x32x32xf32> to vector<2x32x32xf32>
    %c0_11 = arith.constant 0 : index
    %c0_12 = arith.constant 0 : index
    %c0_13 = arith.constant 0 : index
    %c0_14 = arith.constant 0 : index
    %11 = vector.load %arg6[%c0_11, %c0_12, %c0_13, %c0_14] : memref<1x2x32x1xf32, #tpu.memory_space<vmem>>, vector<1x2x32x1xf32>
    %12 = vector.shape_cast %11 : vector<1x2x32x1xf32> to vector<2x32x1xf32>
    %cst_15 = arith.constant 0.000000e+00 : f32
    %13 = vector.broadcast %cst_15 : f32 to vector<2x32x128xf32>
    %14 = arith.maximumf %8, %13 : vector<2x32x128xf32>
    %cst_16 = arith.constant dense<0.000000e+00> : vector<2x32x128xf32>
    %15 = tpu.matmul %10, %14, %cst_16 {dimension_numbers = #tpu.dot_dimension_numbers<[2], [1], [1], [2], [0, 0, 0, 1, 1, 2], [0], [0]>} : vector<2x32x32xf32>, vector<2x32x128xf32>, vector<2x32x128xf32> -> vector<2x32x128xf32>
    %16 = vector.broadcast %12 : vector<2x32x1xf32> to vector<2x32x128xf32>
    %17 = arith.addf %15, %16 : vector<2x32x128xf32>
    %c0_17 = arith.constant 0 : index
    %c0_18 = arith.constant 0 : index
    %c0_19 = arith.constant 0 : index
    %c0_20 = arith.constant 0 : index
    %18 = vector.load %arg7[%c0_17, %c0_18, %c0_19, %c0_20] : memref<1x2x8x32xf32, #tpu.memory_space<vmem>>, vector<1x2x8x32xf32>
    %19 = vector.shape_cast %18 : vector<1x2x8x32xf32> to vector<2x8x32xf32>
    %c0_21 = arith.constant 0 : index
    %c0_22 = arith.constant 0 : index
    %c0_23 = arith.constant 0 : index
    %c0_24 = arith.constant 0 : index
    %20 = vector.load %arg8[%c0_21, %c0_22, %c0_23, %c0_24] : memref<1x2x8x1xf32, #tpu.memory_space<vmem>>, vector<1x2x8x1xf32>
    %21 = vector.shape_cast %20 : vector<1x2x8x1xf32> to vector<2x8x1xf32>
    %cst_25 = arith.constant 0.000000e+00 : f32
    %22 = vector.broadcast %cst_25 : f32 to vector<2x32x128xf32>
    %23 = arith.maximumf %17, %22 : vector<2x32x128xf32>
    %cst_26 = arith.constant dense<0.000000e+00> : vector<2x8x128xf32>
    %24 = tpu.matmul %19, %23, %cst_26 {dimension_numbers = #tpu.dot_dimension_numbers<[2], [1], [1], [2], [0, 0, 0, 1, 1, 2], [0], [0]>} : vector<2x8x32xf32>, vector<2x32x128xf32>, vector<2x8x128xf32> -> vector<2x8x128xf32>
    %25 = vector.broadcast %21 : vector<2x8x1xf32> to vector<2x8x128xf32>
    %26 = arith.addf %24, %25 : vector<2x8x128xf32>
    %27 = vector.shape_cast %26 : vector<2x8x128xf32> to vector<16x128xf32>
    %c0_27 = arith.constant 0 : index
    %c0_28 = arith.constant 0 : index
    %c0_29 = arith.constant 0 : index
    %28 = vector.load %arg9[%c0_27, %c0_28, %c0_29] : memref<1x16x128xf32, #tpu.memory_space<vmem>>, vector<1x16x128xf32>
    %29 = vector.shape_cast %28 : vector<1x16x128xf32> to vector<16x128xf32>
    %30 = vector.shape_cast %27 : vector<16x128xf32> to vector<1x16x128xf32>
    tpu.vector_store %arg9[%c0_27, %c0_28, %c0_29], %30 {strides = array<i32>} : memref<1x16x128xf32, #tpu.memory_space<vmem>>, vector<1x16x128xf32>,
    return
  }
  func.func @transform_0(%arg0: i32, %arg1: i32) -> (i32, i32) {
    %c0_i32 = arith.constant 0 : i32
    %c0_i32_0 = arith.constant 0 : i32
    return %c0_i32, %arg1 : i32, i32
  }
  func.func @transform_1(%arg0: i32, %arg1: i32) -> (i32, i32, i32) {
    %c0_i32 = arith.constant 0 : i32
    %c0_i32_0 = arith.constant 0 : i32
    %c0_i32_1 = arith.constant 0 : i32
    return %arg0, %c0_i32, %c0_i32_0 : i32, i32, i32
  }
  func.func @transform_2(%arg0: i32, %arg1: i32) -> (i32, i32, i32) {
    %c0_i32 = arith.constant 0 : i32
    %c0_i32_0 = arith.constant 0 : i32
    %c0_i32_1 = arith.constant 0 : i32
    return %arg0, %c0_i32, %c0_i32_0 : i32, i32, i32
  }
  func.func @transform_3(%arg0: i32, %arg1: i32) -> (i32, i32, i32, i32) {
    %c0_i32 = arith.constant 0 : i32
    %c0_i32_0 = arith.constant 0 : i32
    %c0_i32_1 = arith.constant 0 : i32
    %c0_i32_2 = arith.constant 0 : i32
    return %arg0, %c0_i32, %c0_i32_0, %c0_i32_1 : i32, i32, i32, i32
  }
  func.func @transform_4(%arg0: i32, %arg1: i32) -> (i32, i32, i32, i32) {
    %c0_i32 = arith.constant 0 : i32
    %c0_i32_0 = arith.constant 0 : i32
    %c0_i32_1 = arith.constant 0 : i32
    %c0_i32_2 = arith.constant 0 : i32
    return %arg0, %c0_i32, %c0_i32_0, %c0_i32_1 : i32, i32, i32, i32
  }
  func.func @transform_5(%arg0: i32, %arg1: i32) -> (i32, i32, i32, i32) {
    %c0_i32 = arith.constant 0 : i32
    %c0_i32_0 = arith.constant 0 : i32
    %c0_i32_1 = arith.constant 0 : i32
    %c0_i32_2 = arith.constant 0 : i32
    return %arg0, %c0_i32, %c0_i32_0, %c0_i32_1 : i32, i32, i32, i32
  }
  func.func @transform_6(%arg0: i32, %arg1: i32) -> (i32, i32, i32, i32) {
    %c0_i32 = arith.constant 0 : i32
    %c0_i32_0 = arith.constant 0 : i32
    %c0_i32_1 = arith.constant 0 : i32
    %c0_i32_2 = arith.constant 0 : i32
    return %arg0, %c0_i32, %c0_i32_0, %c0_i32_1 : i32, i32, i32, i32
  }
  func.func @transform_7(%arg0: i32, %arg1: i32) -> (i32, i32, i32) {
    %c0_i32 = arith.constant 0 : i32
    %c0_i32_0 = arith.constant 0 : i32
    return %arg0, %c0_i32, %arg1 : i32, i32, i32
  }
}

</mosaic_0001>

<llo_original>
// kernel: tpu_custom_call.1
$region0: #{tpu_custom_call.1}
  #allocation0 [shape = 'u32[]', space=smem, size = 0x4, offset = 0x4, fixed_abs, tag = 'smem constant byte address 0x4 - core index']
  #allocation1 [shape = 'u32[144,128]{1,0:T(1,128)}', space=vmem, size = 0x12000, scoped, tag = 'internal scratch']
  %s0 = inlined_call_operand.vmem [shape: f32[24,128], index: 0, kind: input, shape index: {}]
  %s1 = inlined_call_operand.vmem [shape: f32[2,64,24], index: 1, kind: input, shape index: {}]
  %s2 = inlined_call_operand.vmem [shape: f32[2,64,1], index: 2, kind: input, shape index: {}]
  %s3 = inlined_call_operand.vmem [shape: f32[2,2,32,32], index: 3, kind: input, shape index: {}]
  %s4 = inlined_call_operand.vmem [shape: f32[2,2,32,1], index: 4, kind: input, shape index: {}]
  %s5 = inlined_call_operand.vmem [shape: f32[2,2,8,32], index: 5, kind: input, shape index: {}]
  %s6 = inlined_call_operand.vmem [shape: f32[2,2,8,1], index: 6, kind: input, shape index: {}]
  %s7 = inlined_call_operand.hbm [shape: f32[2,16,128], index: 7, kind: output, shape index: {}]
  %s8 = sld [smem:[#allocation0]]
  $region61: #{tpu_custom_call.1} parent=0
    _
  %s10 = ssub.s32 1, %s8
  %s11 = scalar_select 0, %s10, %s8
  $region1: #{tpu_custom_call.1} parent=0
    #allocation2 [shape = 'u8[16384]{0}', space=vmem, size = 0x4000, scoped, tag = 'output window, operand 0']
    #allocation3 [shape = 's32[2]{0}', space=sflag, size = 0x8, scoped, tag = 'scoped memory for tpu_custom_call.1']
    %12 = vsyncpa [#allocation3], 0
    %s13 = scalar_lea.sflag [#allocation3], 1
    %14 = vsyncpa %s13, 0
    loop: start=0, step=1, limit=4
    $region2: #{tpu_custom_call.1} parent=1 // loop_pre_header
      _
    $region3: #{tpu_custom_call.1} parent=1 // loop_header
      %s16 = sphi 0, %s20
      %p17 = scmp.ge.s32.totalorder %s16, 4
      %s23 = sphi 0, %s35
      %s24 = sphi 0, %s31
      %s25 = sphi 0, %s23
      %s26 = sphi 0, %s24
      %s27 = sphi 0, %s25
      %s28 = sphi 0, %s26
      %s38 = sphi 0, %s40
      %s41 = sphi 0, %s38
      %s42 = sphi 0, %s41
      %s58 = sphi 0, %s42
      %s64 = sphi 0, %s66
      %s67 = sphi 0, %s64
      %s68 = sphi 0, %s67
      %s84 = sphi 0, %s68
      %s90 = sphi 0, %s92
      %s93 = sphi 0, %s90
      %s94 = sphi 0, %s93
      %s110 = sphi 0, %s94
      %s116 = sphi 0, %s118
      %s119 = sphi 0, %s116
      %s120 = sphi 0, %s119
      %s136 = sphi 0, %s120
      %s142 = sphi 0, %s144
      %s145 = sphi 0, %s142
      %s146 = sphi 0, %s145
      %s162 = sphi 0, %s146
      %s168 = sphi 0, %s170
      %s171 = sphi 0, %s168
      %s172 = sphi 0, %s171
      %s188 = sphi 0, %s172
      %s194 = sphi 0, %s196
      %s197 = sphi 0, %s194
      %s198 = sphi 0, %s197
      %s214 = sphi 0, %s198
      %s222 = sphi 0, %s224
      %s225 = sphi 0, %s222
      %s226 = sphi 0, %s225
      %s242 = sphi 0, %s226
    $region4: #{tpu_custom_call.1} parent=1 // loop_header_branch
      %19 = sbr.rel (%p17) target = $region8
    $region5: #{tpu_custom_call.1} parent=1 // loop_body
      %s21 = ssub.s32 %s16, 1
      %s22 = ssub.s32 %s16, 2
      %s29 = sadd.s32 1, %s24
      %p30 = scmp.ge.s32.totalorder %s29, 1
      %s31 = scalar_select %p30, 0, %s29
      %s32 = sadd.s32 1, %s23
      %s33 = scalar_select %p30, %s32, %s23
      %p34 = scmp.ge.s32.totalorder %s33, 2
      %s35 = scalar_select %p34, 0, %s33
      %s36 = ssub.s32 %s24, %s31
      %p37 = scmp.eq.s32.totalorder %s36, 0
      %s39 = sadd.s32 %s38, 1
      %s40 = scalar_select %p37, %s38, %s39
      %p43 = pneg %p37
      %p44 = scmp.eq.s32.totalorder %s16, 1
      %p45 = por %p43, %p44
      %p46 = scmp.ne.s32.totalorder %s38, %s41
      %p47 = scmp.eq.s32.totalorder %s16, 0
      %p48 = por %p46, %p47
      %p49 = scmp.ne.s32.totalorder %s38, %s41
      %p50 = scmp.eq.s32.totalorder %s21, 1
      %p51 = por %p49, %p50
      %p52 = scmp.ne.s32.totalorder %s41, %s42
      %p53 = scmp.eq.s32.totalorder %s21, 0
      %p54 = por %p52, %p53
      %p55 = scmp.ne.s32.totalorder %s41, %s42
      %p56 = scmp.eq.s32.totalorder %s22, 1
      %p57 = por %p55, %p56
      %p59 = scmp.ne.s32.totalorder %s42, %s58
      %p60 = scmp.eq.s32.totalorder %s22, 0
      %p61 = por %p59, %p60
      %s62 = ssub.s32 %s23, %s35
      %p63 = scmp.eq.s32.totalorder %s62, 0
      %s65 = sadd.s32 %s64, 1
      %s66 = scalar_select %p63, %s64, %s65
      %p69 = pneg %p63
      %p70 = scmp.eq.s32.totalorder %s16, 1
      %p71 = por %p69, %p70
      %p72 = scmp.ne.s32.totalorder %s64, %s67
      %p73 = scmp.eq.s32.totalorder %s16, 0
      %p74 = por %p72, %p73
      %p75 = scmp.ne.s32.totalorder %s64, %s67
      %p76 = scmp.eq.s32.totalorder %s21, 1
      %p77 = por %p75, %p76
      %p78 = scmp.ne.s32.totalorder %s67, %s68
      %p79 = scmp.eq.s32.totalorder %s21, 0
      %p80 = por %p78, %p79
      %p81 = scmp.ne.s32.totalorder %s67, %s68
      %p82 = scmp.eq.s32.totalorder %s22, 1
      %p83 = por %p81, %p82
      %p85 = scmp.ne.s32.totalorder %s68, %s84
      %p86 = scmp.eq.s32.totalorder %s22, 0
      %p87 = por %p85, %p86
      %s88 = ssub.s32 %s23, %s35
      %p89 = scmp.eq.s32.totalorder %s88, 0
      %s91 = sadd.s32 %s90, 1
      %s92 = scalar_select %p89, %s90, %s91
      %p95 = pneg %p89
      %p96 = scmp.eq.s32.totalorder %s16, 1
      %p97 = por %p95, %p96
      %p98 = scmp.ne.s32.totalorder %s90, %s93
      %p99 = scmp.eq.s32.totalorder %s16, 0
      %p100 = por %p98, %p99
      %p101 = scmp.ne.s32.totalorder %s90, %s93
      %p102 = scmp.eq.s32.totalorder %s21, 1
      %p103 = por %p101, %p102
      %p104 = scmp.ne.s32.totalorder %s93, %s94
      %p105 = scmp.eq.s32.totalorder %s21, 0
      %p106 = por %p104, %p105
      %p107 = scmp.ne.s32.totalorder %s93, %s94
      %p108 = scmp.eq.s32.totalorder %s22, 1
      %p109 = por %p107, %p108
      %p111 = scmp.ne.s32.totalorder %s94, %s110
      %p112 = scmp.eq.s32.totalorder %s22, 0
      %p113 = por %p111, %p112
      %s114 = ssub.s32 %s23, %s35
      %p115 = scmp.eq.s32.totalorder %s114, 0
      %s117 = sadd.s32 %s116, 1
      %s118 = scalar_select %p115, %s116, %s117
      %p121 = pneg %p115
      %p122 = scmp.eq.s32.totalorder %s16, 1
      %p123 = por %p121, %p122
      %p124 = scmp.ne.s32.totalorder %s116, %s119
      %p125 = scmp.eq.s32.totalorder %s16, 0
      %p126 = por %p124, %p125
      %p127 = scmp.ne.s32.totalorder %s116, %s119
      %p128 = scmp.eq.s32.totalorder %s21, 1
      %p129 = por %p127, %p128
      %p130 = scmp.ne.s32.totalorder %s119, %s120
      %p131 = scmp.eq.s32.totalorder %s21, 0
      %p132 = por %p130, %p131
      %p133 = scmp.ne.s32.totalorder %s119, %s120
      %p134 = scmp.eq.s32.totalorder %s22, 1
      %p135 = por %p133, %p134
      %p137 = scmp.ne.s32.totalorder %s120, %s136
      %p138 = scmp.eq.s32.totalorder %s22, 0
      %p139 = por %p137, %p138
      %s140 = ssub.s32 %s23, %s35
      %p141 = scmp.eq.s32.totalorder %s140, 0
      %s143 = sadd.s32 %s142, 1
      %s144 = scalar_select %p141, %s142, %s143
      %p147 = pneg %p141
      %p148 = scmp.eq.s32.totalorder %s16, 1
      %p149 = por %p147, %p148
      %p150 = scmp.ne.s32.totalorder %s142, %s145
      %p151 = scmp.eq.s32.totalorder %s16, 0
      %p152 = por %p150, %p151
      %p153 = scmp.ne.s32.totalorder %s142, %s145
      %p154 = scmp.eq.s32.totalorder %s21, 1
      %p155 = por %p153, %p154
      %p156 = scmp.ne.s32.totalorder %s145, %s146
      %p157 = scmp.eq.s32.totalorder %s21, 0
      %p158 = por %p156, %p157
      %p159 = scmp.ne.s32.totalorder %s145, %s146
      %p160 = scmp.eq.s32.totalorder %s22, 1
      %p161 = por %p159, %p160
      %p163 = scmp.ne.s32.totalorder %s146, %s162
      %p164 = scmp.eq.s32.totalorder %s22, 0
      %p165 = por %p163, %p164
      %s166 = ssub.s32 %s23, %s35
      %p167 = scmp.eq.s32.totalorder %s166, 0
      %s169 = sadd.s32 %s168, 1
      %s170 = scalar_select %p167, %s168, %s169
      %p173 = pneg %p167
      %p174 = scmp.eq.s32.totalorder %s16, 1
      %p175 = por %p173, %p174
      %p176 = scmp.ne.s32.totalorder %s168, %s171
      %p177 = scmp.eq.s32.totalorder %s16, 0
      %p178 = por %p176, %p177
      %p179 = scmp.ne.s32.totalorder %s168, %s171
      %p180 = scmp.eq.s32.totalorder %s21, 1
      %p181 = por %p179, %p180
      %p182 = scmp.ne.s32.totalorder %s171, %s172
      %p183 = scmp.eq.s32.totalorder %s21, 0
      %p184 = por %p182, %p183
      %p185 = scmp.ne.s32.totalorder %s171, %s172
      %p186 = scmp.eq.s32.totalorder %s22, 1
      %p187 = por %p185, %p186
      %p189 = scmp.ne.s32.totalorder %s172, %s188
      %p190 = scmp.eq.s32.totalorder %s22, 0
      %p191 = por %p189, %p190
      %s192 = ssub.s32 %s23, %s35
      %p193 = scmp.eq.s32.totalorder %s192, 0
      %s195 = sadd.s32 %s194, 1
      %s196 = scalar_select %p193, %s194, %s195
      %p199 = pneg %p193
      %p200 = scmp.eq.s32.totalorder %s16, 1
      %p201 = por %p199, %p200
      %p202 = scmp.ne.s32.totalorder %s194, %s197
      %p203 = scmp.eq.s32.totalorder %s16, 0
      %p204 = por %p202, %p203
      %p205 = scmp.ne.s32.totalorder %s194, %s197
      %p206 = scmp.eq.s32.totalorder %s21, 1
      %p207 = por %p205, %p206
      %p208 = scmp.ne.s32.totalorder %s197, %s198
      %p209 = scmp.eq.s32.totalorder %s21, 0
      %p210 = por %p208, %p209
      %p211 = scmp.ne.s32.totalorder %s197, %s198
      %p212 = scmp.eq.s32.totalorder %s22, 1
      %p213 = por %p211, %p212
      %p215 = scmp.ne.s32.totalorder %s198, %s214
      %p216 = scmp.eq.s32.totalorder %s22, 0
      %p217 = por %p215, %p216
      %s218 = ssub.s32 %s23, %s35
      %s219 = ssub.s32 %s24, %s31
      %s220 = sor.u32 %s218, %s219
      %p221 = scmp.eq.s32.totalorder %s220, 0
      %s223 = sadd.s32 %s222, 1
      %s224 = scalar_select %p221, %s222, %s223
      %p227 = pneg %p221
      %p228 = scmp.eq.s32.totalorder %s16, 1
      %p229 = por %p227, %p228
      %p230 = scmp.ne.s32.totalorder %s222, %s225
      %p231 = scmp.eq.s32.totalorder %s16, 0
      %p232 = por %p230, %p231
      %p233 = scmp.ne.s32.totalorder %s222, %s225
      %p234 = scmp.eq.s32.totalorder %s21, 1
      %p235 = por %p233, %p234
      %p236 = scmp.ne.s32.totalorder %s225, %s226
      %p237 = scmp.eq.s32.totalorder %s21, 0
      %p238 = por %p236, %p237
      %p239 = scmp.ne.s32.totalorder %s225, %s226
      %p240 = scmp.eq.s32.totalorder %s22, 1
      %p241 = por %p239, %p240
      %p243 = scmp.ne.s32.totalorder %s226, %s242
      %p244 = scmp.eq.s32.totalorder %s22, 0
      %p245 = por %p243, %p244
      %p246 = scmp.le.s32.totalorder 1, %s16
      %p247 = scmp.lt.s32.totalorder %s16, 3
      %p248 = pnand %p246, %p247
      %p249 = pneg %p248
      // Predicated region
      $region9: #{tpu_custom_call.1} parent=5 // pred_check
        _
      $region10: #{tpu_custom_call.1} parent=5 // pred_check_branch
        %251 = sbr.rel (%p248) target = $region12
      $region11: #{tpu_custom_call.1} parent=5 // pred_region
        %s252 = ssub.s32 %s16, 1
        // Predicated region
        $region13: #{tpu_custom_call.1} parent=11 // pred_check
          %p253 = pneg %p54
        $region14: #{tpu_custom_call.1} parent=11 // pred_check_branch
          %255 = sbr.rel (%p253) target = $region16
        $region15: #{tpu_custom_call.1} parent=11 // pred_region
          %p256 = scmp.lt.s32.totalorder %s26, 0
          %s257 = scalar_select %p256, %s26, 0
          %s258 = smul.addr %s257, 8
          %s259 = scalar_lea.vmem %s0, %s258
        $region16: #{tpu_custom_call.1} parent=11 // pred_fallthru
          _
      $region12: #{tpu_custom_call.1} parent=5 // pred_fallthru
        _
      %p260 = scmp.lt.s32.totalorder %s16, 2
      // Predicated region
      $region17: #{tpu_custom_call.1} parent=5 // pred_check
        %p261 = pneg %p260
      $region18: #{tpu_custom_call.1} parent=5 // pred_check_branch
        %263 = sbr.rel (%p261) target = $region20
      $region19: #{tpu_custom_call.1} parent=5 // pred_region
        // Predicated region
        $region21: #{tpu_custom_call.1} parent=19 // pred_check
          %p264 = pneg %p74
        $region22: #{tpu_custom_call.1} parent=19 // pred_check_branch
          %266 = sbr.rel (%p264) target = $region24
        $region23: #{tpu_custom_call.1} parent=19 // pred_region
          %p267 = scmp.lt.s32.totalorder %s23, 1
          %s268 = scalar_select %p267, %s23, 1
          %s269 = smul.addr %s268, 8
          %s270 = smul.addr %s269, 8
          %s271 = scalar_lea.vmem %s1, %s270
        $region24: #{tpu_custom_call.1} parent=19 // pred_fallthru
          _
        // Predicated region
        $region25: #{tpu_custom_call.1} parent=19 // pred_check
          %p272 = pneg %p100
        $region26: #{tpu_custom_call.1} parent=19 // pred_check_branch
          %274 = sbr.rel (%p272) target = $region28
        $region27: #{tpu_custom_call.1} parent=19 // pred_region
          %p275 = scmp.lt.s32.totalorder %s23, 1
          %s276 = scalar_select %p275, %s23, 1
          %s277 = smul.addr %s276, 8
          %s278 = smul.addr %s277, 8
          %s279 = scalar_lea.vmem %s2, %s278
        $region28: #{tpu_custom_call.1} parent=19 // pred_fallthru
          _
        // Predicated region
        $region29: #{tpu_custom_call.1} parent=19 // pred_check
          %p280 = pneg %p126
        $region30: #{tpu_custom_call.1} parent=19 // pred_check_branch
          %282 = sbr.rel (%p280) target = $region32
        $region31: #{tpu_custom_call.1} parent=19 // pred_region
          %p283 = scmp.lt.s32.totalorder %s23, 1
          %s284 = scalar_select %p283, %s23, 1
          %s285 = smul.addr %s284, 8
          %s286 = smul.addr %s285, 8
          %s287 = scalar_lea.vmem %s3, %s286
        $region32: #{tpu_custom_call.1} parent=19 // pred_fallthru
          _
        // Predicated region
        $region33: #{tpu_custom_call.1} parent=19 // pred_check
          %p288 = pneg %p152
        $region34: #{tpu_custom_call.1} parent=19 // pred_check_branch
          %290 = sbr.rel (%p288) target = $region36
        $region35: #{tpu_custom_call.1} parent=19 // pred_region
          %p291 = scmp.lt.s32.totalorder %s23, 1
          %s292 = scalar_select %p291, %s23, 1
          %s293 = smul.addr %s292, 8
          %s294 = smul.addr %s293, 8
          %s295 = scalar_lea.vmem %s4, %s294
        $region36: #{tpu_custom_call.1} parent=19 // pred_fallthru
          _
        // Predicated region
        $region37: #{tpu_custom_call.1} parent=19 // pred_check
          %p296 = pneg %p178
        $region38: #{tpu_custom_call.1} parent=19 // pred_check_branch
          %298 = sbr.rel (%p296) target = $region40
        $region39: #{tpu_custom_call.1} parent=19 // pred_region
          %p299 = scmp.lt.s32.totalorder %s23, 1
          %s300 = scalar_select %p299, %s23, 1
          %s301 = smul.addr %s300, 2
          %s302 = smul.addr %s301, 8
          %s303 = scalar_lea.vmem %s5, %s302
        $region40: #{tpu_custom_call.1} parent=19 // pred_fallthru
          _
        // Predicated region
        $region41: #{tpu_custom_call.1} parent=19 // pred_check
          %p304 = pneg %p204
        $region42: #{tpu_custom_call.1} parent=19 // pred_check_branch
          %306 = sbr.rel (%p304) target = $region44
        $region43: #{tpu_custom_call.1} parent=19 // pred_region
          %p307 = scmp.lt.s32.totalorder %s23, 1
          %s308 = scalar_select %p307, %s23, 1
          %s309 = smul.addr %s308, 2
          %s310 = smul.addr %s309, 8
          %s311 = scalar_lea.vmem %s6, %s310
        $region44: #{tpu_custom_call.1} parent=19 // pred_fallthru
          _
      $region20: #{tpu_custom_call.1} parent=5 // pred_fallthru
        _
      %p312 = scmp.le.s32.totalorder 1, %s16
      %p313 = scmp.lt.s32.totalorder %s16, 3
      %p314 = pnand %p312, %p313
      %p315 = pneg %p314
      // Predicated region
      $region45: #{tpu_custom_call.1} parent=5 // pred_check
        _
      $region46: #{tpu_custom_call.1} parent=5 // pred_check_branch
        %317 = sbr.rel (%p314) target = $region48
      $region47: #{tpu_custom_call.1} parent=5 // pred_region
        %s318 = ssub.s32 %s16, 1
        %p319 = scmp.lt.s32.totalorder %s26, 0
        %s320 = scalar_select %p319, %s26, 0
        %s321 = smul.addr %s320, 8
        %s322 = scalar_lea.vmem %s0, %s321
        %p323 = pneg %p54
        %p324 = pneg %p51
        %p325 = scmp.lt.s32.totalorder %s25, 1
        %s326 = scalar_select %p325, %s25, 1
        %s327 = smul.addr %s326, 8
        %s328 = smul.addr %s327, 8
        %s329 = scalar_lea.vmem %s1, %s328
        %p330 = pneg %p80
        %p331 = pneg %p77
        %p332 = scmp.lt.s32.totalorder %s25, 1
        %s333 = scalar_select %p332, %s25, 1
        %s334 = smul.addr %s333, 8
        %s335 = smul.addr %s334, 8
        %s336 = scalar_lea.vmem %s2, %s335
        %p337 = pneg %p106
        %p338 = pneg %p103
        %p339 = scmp.lt.s32.totalorder %s25, 1
        %s340 = scalar_select %p339, %s25, 1
        %s341 = smul.addr %s340, 8
        %s342 = smul.addr %s341, 8
        %s343 = scalar_lea.vmem %s3, %s342
        %p344 = pneg %p132
        %p345 = pneg %p129
        %p346 = scmp.lt.s32.totalorder %s25, 1
        %s347 = scalar_select %p346, %s25, 1
        %s348 = smul.addr %s347, 8
        %s349 = smul.addr %s348, 8
        %s350 = scalar_lea.vmem %s4, %s349
        %p351 = pneg %p158
        %p352 = pneg %p155
        %p353 = scmp.lt.s32.totalorder %s25, 1
        %s354 = scalar_select %p353, %s25, 1
        %s355 = smul.addr %s354, 2
        %s356 = smul.addr %s355, 8
        %s357 = scalar_lea.vmem %s5, %s356
        %p358 = pneg %p184
        %p359 = pneg %p181
        %p360 = scmp.lt.s32.totalorder %s25, 1
        %s361 = scalar_select %p360, %s25, 1
        %s362 = smul.addr %s361, 2
        %s363 = smul.addr %s362, 8
        %s364 = scalar_lea.vmem %s6, %s363
        %p365 = pneg %p210
        %p366 = pneg %p207
        %p367 = pneg %p238
        %p368 = pneg %p235
        %s369 = sand.u32 %s225, 1
        %s370 = scalar_lea.sflag [#allocation3], %s369
        %s371 = sand.u32 %s225, 1
        %s372 = smul.addr %s371, 16
        %s373 = scalar_lea.vmem [#allocation2], %s372
        %p374 = scmp.lt.s32.totalorder %s26, 0
        %s375 = scalar_select %p374, %s26, 0
        %s376 = smul.addr %s375, 8
        %s377 = scalar_lea.vmem %s0, %s376
        %p378 = scmp.lt.s32.totalorder %s25, 1
        %s379 = scalar_select %p378, %s25, 1
        %s380 = smul.addr %s379, 8
        %s381 = smul.addr %s380, 8
        %s382 = scalar_lea.vmem %s1, %s381
        %p383 = scmp.lt.s32.totalorder %s25, 1
        %s384 = scalar_select %p383, %s25, 1
        %s385 = smul.addr %s384, 8
        %s386 = smul.addr %s385, 8
        %s387 = scalar_lea.vmem %s2, %s386
        %p388 = scmp.lt.s32.totalorder %s25, 1
        %s389 = scalar_select %p388, %s25, 1
        %s390 = smul.addr %s389, 8
        %s391 = smul.addr %s390, 8
        %s392 = scalar_lea.vmem %s3, %s391
        %p393 = scmp.lt.s32.totalorder %s25, 1
        %s394 = scalar_select %p393, %s25, 1
        %s395 = smul.addr %s394, 8
        %s396 = smul.addr %s395, 8
        %s397 = scalar_lea.vmem %s4, %s396
        %p398 = scmp.lt.s32.totalorder %s25, 1
        %s399 = scalar_select %p398, %s25, 1
        %s400 = smul.addr %s399, 2
        %s401 = smul.addr %s400, 8
        %s402 = scalar_lea.vmem %s5, %s401
        %p403 = scmp.lt.s32.totalorder %s25, 1
        %s404 = scalar_select %p403, %s25, 1
        %s405 = smul.addr %s404, 2
        %s406 = smul.addr %s405, 8
        %s407 = scalar_lea.vmem %s6, %s406
        %v408 = vld [vmem:[%s382] sm:$0xff]
        %v409 = vld [vmem:[%s382 + $0x8] sm:$0xff]
        %v410 = vld [vmem:[%s382 + $0x10] sm:$0xff]
        %v411 = vld [vmem:[%s382 + $0x18] sm:$0xff]
        %v412 = vld [vmem:[%s382 + $0x20] sm:$0xff]
        %v413 = vld [vmem:[%s382 + $0x28] sm:$0xff]
        %v414 = vld [vmem:[%s382 + $0x30] sm:$0xff]
        %v415 = vld [vmem:[%s382 + $0x38] sm:$0xff]
        %v416 = vld [vmem:[%s377] sm:$0xff]
        %v417 = vld [vmem:[%s377 + $0x8] sm:$0xff]
        %v418 = vld [vmem:[%s377 + $0x10] sm:$0xff]
        %v419 = vld [vmem:[%s387] sm:$0xff]
        %v420 = vld [vmem:[%s387 + $0x8] sm:$0xff]
        %v421 = vld [vmem:[%s387 + $0x10] sm:$0xff]
        %v422 = vld [vmem:[%s387 + $0x18] sm:$0xff]
        %v423 = vld [vmem:[%s387 + $0x20] sm:$0xff]
        %v424 = vld [vmem:[%s387 + $0x28] sm:$0xff]
        %v425 = vld [vmem:[%s387 + $0x30] sm:$0xff]
        %v426 = vld [vmem:[%s387 + $0x38] sm:$0xff]
        %428 = vset.pattern.permute.xlu0 0
        %429 = vperm.xlu0 %428, %v419
        %v430 = vpop.permute.xlu0 %429
        %433 = vset.pattern.permute.xlu0 0
        %434 = vperm.xlu0 %433, %v420
        %v435 = vpop.permute.xlu0 %434
        %438 = vset.pattern.permute.xlu0 0
        %439 = vperm.xlu0 %438, %v421
        %v440 = vpop.permute.xlu0 %439
        %443 = vset.pattern.permute.xlu0 0
        %444 = vperm.xlu0 %443, %v422
        %v445 = vpop.permute.xlu0 %444
        %448 = vset.pattern.permute.xlu0 0
        %449 = vperm.xlu0 %448, %v423
        %v450 = vpop.permute.xlu0 %449
        %453 = vset.pattern.permute.xlu0 0
        %454 = vperm.xlu0 %453, %v424
        %v455 = vpop.permute.xlu0 %454
        %458 = vset.pattern.permute.xlu0 0
        %459 = vperm.xlu0 %458, %v425
        %v460 = vpop.permute.xlu0 %459
        %463 = vset.pattern.permute.xlu0 0
        %464 = vperm.xlu0 %463, %v426
        %v465 = vpop.permute.xlu0 %464
        %vm467 = vcmask 195584
        %v469 = vsel %vm467, %v408, 0
        %v472 = vsel %vm467, %v409, 0
        %v475 = vsel %vm467, %v410, 0
        %v478 = vsel %vm467, %v411, 0
        %v481 = vsel %vm467, %v412, 0
        %v484 = vsel %vm467, %v413, 0
        %v487 = vsel %vm467, %v414, 0
        %v490 = vsel %vm467, %v415, 0
        %492 = vmatprep.subr.mxu0 0.0
        %493 = vmatpush1.msra.mxu0 %v416
        %494 = vmatprep.subr.mxu0 0.0
        %495 = vmatpush1.msra.mxu0 %v417
        %496 = vmatprep.subr.mxu0 0.0
        %497 = vmatpush1.msra.mxu0 %v418
        %498 = vmatprep.subr.mxu0 0.0
        %499 = vmatpush1.msra.mxu0 0.0
        %500 = vmatprep.subr.mxu0 0.0
        %501 = vmatpush1.msra.mxu0 0.0
        %502 = vmatprep.subr.mxu0 0.0
        %503 = vmatpush1.msra.mxu0 0.0
        %504 = vmatprep.subr.mxu0 0.0
        %505 = vmatpush1.msra.mxu0 0.0
        %506 = vmatprep.subr.mxu0 0.0
        %507 = vmatpush1.msra.mxu0 0.0
        %508 = vmatprep.subr.mxu0 0.0
        %509 = vmatpush1.msra.mxu0 0.0
        %510 = vmatprep.subr.mxu0 0.0
        %511 = vmatpush1.msra.mxu0 0.0
        %512 = vmatprep.subr.mxu0 0.0
        %513 = vmatpush1.msra.mxu0 0.0
        %514 = vmatprep.subr.mxu0 0.0
        %515 = vmatpush1.msra.mxu0 0.0
        %516 = vmatprep.subr.mxu0 0.0
        %517 = vmatpush1.msra.mxu0 0.0
        %518 = vmatprep.subr.mxu0 0.0
        %519 = vmatpush1.msra.mxu0 0.0
        %520 = vmatprep.subr.mxu0 0.0
        %521 = vmatpush1.msra.mxu0 0.0
        %522 = vmatprep.subr.mxu0 0.0
        %523 = vmatpush1.msra.mxu0 0.0
        %524 = vmatprep.subr.mxu0 0.0
        %525 = vmatpush1.msra.mxu0 0.0
        %526 = vmatprep.subr.mxu0 0.0
        %527 = vmatpush1.msra.mxu0 0.0
        %528 = vmatprep.subr.mxu0 0.0
        %529 = vmatpush1.msra.mxu0 0.0
        %530 = vmatprep.subr.mxu0 0.0
        %531 = vmatpush1.msra.mxu0 0.0
        %532 = vmatprep.subr.mxu0 0.0
        %533 = vmatpush1.msra.mxu0 0.0
        %534 = vmatprep.subr.mxu0 0.0
        %535 = vmatpush1.msra.mxu0 0.0
        %536 = vmatprep.subr.mxu0 0.0
        %537 = vmatpush1.msra.mxu0 0.0
        %538 = vmatprep.subr.mxu0 0.0
        %539 = vmatpush1.msra.mxu0 0.0
        %540 = vmatprep.subr.mxu0 0.0
        %541 = vmatpush1.msra.mxu0 0.0
        %542 = vmatprep.subr.mxu0 0.0
        %543 = vmatpush1.msra.mxu0 0.0
        %544 = vmatprep.subr.mxu0 0.0
        %545 = vmatpush1.msra.mxu0 0.0
        %546 = vmatprep.subr.mxu0 0.0
        %547 = vmatpush1.msra.mxu0 0.0
        %548 = vmatprep.subr.mxu0 0.0
        %549 = vmatpush1.msra.mxu0 0.0
        %550 = vmatprep.subr.mxu0 0.0
        %551 = vmatpush1.msra.mxu0 0.0
        %552 = vmatprep.subr.mxu0 0.0
        %553 = vmatpush1.msra.mxu0 0.0
        %554 = vmatprep.subr.mxu0 0.0
        %555 = vmatpush1.msra.mxu0 0.0
        %556 = vmatprep.mubr.f32.mxu0 0.0
        %557 = vmatmul.mubr.f32.gmra.mrb[0].mxu0 %v469
        %v558 = vpop.f32.mrb[0].mxu0
        %v559 = vadd.f32 %v430, %v558
        %v560 = vpop.f32.mrb[0].mxu0
        %561 = vmatprep.mubr.f32.mxu0 0.0
        %562 = vmatmul.mubr.f32.gmra.mrb[0].mxu0 %v472
        %v563 = vpop.f32.mrb[0].mxu0
        %v564 = vadd.f32 %v435, %v563
        %v565 = vpop.f32.mrb[0].mxu0
        %566 = vmatprep.mubr.f32.mxu0 0.0
        %567 = vmatmul.mubr.f32.gmra.mrb[0].mxu0 %v475
        %v568 = vpop.f32.mrb[0].mxu0
        %v569 = vadd.f32 %v440, %v568
        %v570 = vpop.f32.mrb[0].mxu0
        %571 = vmatprep.mubr.f32.mxu0 0.0
        %572 = vmatmul.mubr.f32.gmra.mrb[0].mxu0 %v478
        %v573 = vpop.f32.mrb[0].mxu0
        %v574 = vadd.f32 %v445, %v573
        %v575 = vpop.f32.mrb[0].mxu0
        %576 = vmatprep.mubr.f32.mxu0 0.0
        %577 = vmatmul.mubr.f32.gmra.mrb[0].mxu0 %v481
        %v578 = vpop.f32.mrb[0].mxu0
        %v579 = vadd.f32 %v450, %v578
        %v580 = vpop.f32.mrb[0].mxu0
        %581 = vmatprep.mubr.f32.mxu0 0.0
        %582 = vmatmul.mubr.f32.gmra.mrb[0].mxu0 %v484
        %v583 = vpop.f32.mrb[0].mxu0
        %v584 = vadd.f32 %v455, %v583
        %v585 = vpop.f32.mrb[0].mxu0
        %586 = vmatprep.mubr.f32.mxu0 0.0
        %587 = vmatmul.mubr.f32.gmra.mrb[0].mxu0 %v487
        %v588 = vpop.f32.mrb[0].mxu0
        %v589 = vadd.f32 %v460, %v588
        %v590 = vpop.f32.mrb[0].mxu0
        %591 = vmatprep.mubr.f32.mxu0 0.0
        %592 = vmatmul.mubr.f32.gmra.mrb[0].mxu0 %v490
        %v593 = vpop.f32.mrb[0].mxu0
        %v594 = vadd.f32 %v465, %v593
        %v595 = vpop.f32.mrb[0].mxu0
        %596 = vdwg.mxu0
        %v597 = vld [vmem:[%s392] sm:$0xff]
        %v598 = vld [vmem:[%s392 + $0x8] sm:$0xff]
        %v599 = vld [vmem:[%s392 + $0x10] sm:$0xff]
        %v600 = vld [vmem:[%s392 + $0x18] sm:$0xff]
        %v601 = vld [vmem:[%s392 + $0x20] sm:$0xff]
        %v602 = vld [vmem:[%s392 + $0x28] sm:$0xff]
        %v603 = vld [vmem:[%s392 + $0x30] sm:$0xff]
        %v604 = vld [vmem:[%s392 + $0x38] sm:$0xff]
        %v605 = vld [vmem:[%s397] sm:$0xff]
        %v606 = vld [vmem:[%s397 + $0x8] sm:$0xff]
        %v607 = vld [vmem:[%s397 + $0x10] sm:$0xff]
        %v608 = vld [vmem:[%s397 + $0x18] sm:$0xff]
        %v609 = vld [vmem:[%s397 + $0x20] sm:$0xff]
        %v610 = vld [vmem:[%s397 + $0x28] sm:$0xff]
        %v611 = vld [vmem:[%s397 + $0x30] sm:$0xff]
        %v612 = vld [vmem:[%s397 + $0x38] sm:$0xff]
        %v613 = vmax.f32 %v559, 0.0
        %v614 = vmax.f32 %v564, 0.0
        %v615 = vmax.f32 %v569, 0.0
        %v616 = vmax.f32 %v574, 0.0
        %v617 = vmax.f32 %v579, 0.0
        %v618 = vmax.f32 %v584, 0.0
        %v619 = vmax.f32 %v589, 0.0
        %v620 = vmax.f32 %v594, 0.0
        %622 = vset.pattern.permute.xlu0 0
        %623 = vperm.xlu0 %622, %v605
        %v624 = vpop.permute.xlu0 %623
        %627 = vset.pattern.permute.xlu0 0
        %628 = vperm.xlu0 %627, %v606
        %v629 = vpop.permute.xlu0 %628
        %632 = vset.pattern.permute.xlu0 0
        %633 = vperm.xlu0 %632, %v607
        %v634 = vpop.permute.xlu0 %633
        %637 = vset.pattern.permute.xlu0 0
        %638 = vperm.xlu0 %637, %v608
        %v639 = vpop.permute.xlu0 %638
        %642 = vset.pattern.permute.xlu0 0
        %643 = vperm.xlu0 %642, %v609
        %v644 = vpop.permute.xlu0 %643
        %647 = vset.pattern.permute.xlu0 0
        %648 = vperm.xlu0 %647, %v610
        %v649 = vpop.permute.xlu0 %648
        %652 = vset.pattern.permute.xlu0 0
        %653 = vperm.xlu0 %652, %v611
        %v654 = vpop.permute.xlu0 %653
        %657 = vset.pattern.permute.xlu0 0
        %658 = vperm.xlu0 %657, %v612
        %v659 = vpop.permute.xlu0 %658
        %vm661 = vcmask 261120
        %v663 = vsel %vm661, %v597, 0
        %v666 = vsel %vm661, %v598, 0
        %v669 = vsel %vm661, %v599, 0
        %v672 = vsel %vm661, %v600, 0
        %674 = vmatprep.subr.mxu0 0.0
        %675 = vmatpush1.msra.mxu0 %v613
        %676 = vmatprep.subr.mxu0 0.0
        %677 = vmatpush1.msra.mxu0 %v614
        %678 = vmatprep.subr.mxu0 0.0
        %679 = vmatpush1.msra.mxu0 %v615
        %680 = vmatprep.subr.mxu0 0.0
        %681 = vmatpush1.msra.mxu0 %v616
        %682 = vmatprep.subr.mxu0 0.0
        %683 = vmatpush1.msra.mxu0 0.0
        %684 = vmatprep.subr.mxu0 0.0
        %685 = vmatpush1.msra.mxu0 0.0
        %686 = vmatprep.subr.mxu0 0.0
        %687 = vmatpush1.msra.mxu0 0.0
        %688 = vmatprep.subr.mxu0 0.0
        %689 = vmatpush1.msra.mxu0 0.0
        %690 = vmatprep.subr.mxu0 0.0
        %691 = vmatpush1.msra.mxu0 0.0
        %692 = vmatprep.subr.mxu0 0.0
        %693 = vmatpush1.msra.mxu0 0.0
        %694 = vmatprep.subr.mxu0 0.0
        %695 = vmatpush1.msra.mxu0 0.0
        %696 = vmatprep.subr.mxu0 0.0
        %697 = vmatpush1.msra.mxu0 0.0
        %698 = vmatprep.subr.mxu0 0.0
        %699 = vmatpush1.msra.mxu0 0.0
        %700 = vmatprep.subr.mxu0 0.0
        %701 = vmatpush1.msra.mxu0 0.0
        %702 = vmatprep.subr.mxu0 0.0
        %703 = vmatpush1.msra.mxu0 0.0
        %704 = vmatprep.subr.mxu0 0.0
        %705 = vmatpush1.msra.mxu0 0.0
        %706 = vmatprep.subr.mxu0 0.0
        %707 = vmatpush1.msra.mxu0 0.0
        %708 = vmatprep.subr.mxu0 0.0
        %709 = vmatpush1.msra.mxu0 0.0
        %710 = vmatprep.subr.mxu0 0.0
        %711 = vmatpush1.msra.mxu0 0.0
        %712 = vmatprep.subr.mxu0 0.0
        %713 = vmatpush1.msra.mxu0 0.0
        %714 = vmatprep.subr.mxu0 0.0
        %715 = vmatpush1.msra.mxu0 0.0
        %716 = vmatprep.subr.mxu0 0.0
        %717 = vmatpush1.msra.mxu0 0.0
        %718 = vmatprep.subr.mxu0 0.0
        %719 = vmatpush1.msra.mxu0 0.0
        %720 = vmatprep.subr.mxu0 0.0
        %721 = vmatpush1.msra.mxu0 0.0
        %722 = vmatprep.subr.mxu0 0.0
        %723 = vmatpush1.msra.mxu0 0.0
        %724 = vmatprep.subr.mxu0 0.0
        %725 = vmatpush1.msra.mxu0 0.0
        %726 = vmatprep.subr.mxu0 0.0
        %727 = vmatpush1.msra.mxu0 0.0
        %728 = vmatprep.subr.mxu0 0.0
        %729 = vmatpush1.msra.mxu0 0.0
        %730 = vmatprep.subr.mxu0 0.0
        %731 = vmatpush1.msra.mxu0 0.0
        %732 = vmatprep.subr.mxu0 0.0
        %733 = vmatpush1.msra.mxu0 0.0
        %734 = vmatprep.subr.mxu0 0.0
        %735 = vmatpush1.msra.mxu0 0.0
        %736 = vmatprep.subr.mxu0 0.0
        %737 = vmatpush1.msra.mxu0 0.0
        %738 = vmatprep.mubr.f32.mxu0 0.0
        %739 = vmatmul.mubr.f32.gmra.mrb[0].mxu0 %v663
        %v740 = vpop.f32.mrb[0].mxu0
        %v741 = vadd.f32 %v624, %v740
        %v742 = vpop.f32.mrb[0].mxu0
        %743 = vmatprep.mubr.f32.mxu0 0.0
        %744 = vmatmul.mubr.f32.gmra.mrb[0].mxu0 %v666
        %v745 = vpop.f32.mrb[0].mxu0
        %v746 = vadd.f32 %v629, %v745
        %v747 = vpop.f32.mrb[0].mxu0
        %748 = vmatprep.mubr.f32.mxu0 0.0
        %749 = vmatmul.mubr.f32.gmra.mrb[0].mxu0 %v669
        %v750 = vpop.f32.mrb[0].mxu0
        %v751 = vadd.f32 %v634, %v750
        %v752 = vpop.f32.mrb[0].mxu0
        %753 = vmatprep.mubr.f32.mxu0 0.0
        %754 = vmatmul.mubr.f32.gmra.mrb[0].mxu0 %v672
        %v755 = vpop.f32.mrb[0].mxu0
        %v756 = vadd.f32 %v639, %v755
        %v757 = vpop.f32.mrb[0].mxu0
        %758 = vdwg.mxu0
        %v760 = vsel %vm661, %v601, 0
        %v763 = vsel %vm661, %v602, 0
        %v766 = vsel %vm661, %v603, 0
        %v769 = vsel %vm661, %v604, 0
        %771 = vmatprep.subr.mxu0 0.0
        %772 = vmatpush1.msra.mxu0 %v617
        %773 = vmatprep.subr.mxu0 0.0
        %774 = vmatpush1.msra.mxu0 %v618
        %775 = vmatprep.subr.mxu0 0.0
        %776 = vmatpush1.msra.mxu0 %v619
        %777 = vmatprep.subr.mxu0 0.0
        %778 = vmatpush1.msra.mxu0 %v620
        %779 = vmatprep.subr.mxu0 0.0
        %780 = vmatpush1.msra.mxu0 0.0
        %781 = vmatprep.subr.mxu0 0.0
        %782 = vmatpush1.msra.mxu0 0.0
        %783 = vmatprep.subr.mxu0 0.0
        %784 = vmatpush1.msra.mxu0 0.0
        %785 = vmatprep.subr.mxu0 0.0
        %786 = vmatpush1.msra.mxu0 0.0
        %787 = vmatprep.subr.mxu0 0.0
        %788 = vmatpush1.msra.mxu0 0.0
        %789 = vmatprep.subr.mxu0 0.0
        %790 = vmatpush1.msra.mxu0 0.0
        %791 = vmatprep.subr.mxu0 0.0
        %792 = vmatpush1.msra.mxu0 0.0
        %793 = vmatprep.subr.mxu0 0.0
        %794 = vmatpush1.msra.mxu0 0.0
        %795 = vmatprep.subr.mxu0 0.0
        %796 = vmatpush1.msra.mxu0 0.0
        %797 = vmatprep.subr.mxu0 0.0
        %798 = vmatpush1.msra.mxu0 0.0
        %799 = vmatprep.subr.mxu0 0.0
        %800 = vmatpush1.msra.mxu0 0.0
        %801 = vmatprep.subr.mxu0 0.0
        %802 = vmatpush1.msra.mxu0 0.0
        %803 = vmatprep.subr.mxu0 0.0
        %804 = vmatpush1.msra.mxu0 0.0
        %805 = vmatprep.subr.mxu0 0.0
        %806 = vmatpush1.msra.mxu0 0.0
        %807 = vmatprep.subr.mxu0 0.0
        %808 = vmatpush1.msra.mxu0 0.0
        %809 = vmatprep.subr.mxu0 0.0
        %810 = vmatpush1.msra.mxu0 0.0
        %811 = vmatprep.subr.mxu0 0.0
        %812 = vmatpush1.msra.mxu0 0.0
        %813 = vmatprep.subr.mxu0 0.0
        %814 = vmatpush1.msra.mxu0 0.0
        %815 = vmatprep.subr.mxu0 0.0
        %816 = vmatpush1.msra.mxu0 0.0
        %817 = vmatprep.subr.mxu0 0.0
        %818 = vmatpush1.msra.mxu0 0.0
        %819 = vmatprep.subr.mxu0 0.0
        %820 = vmatpush1.msra.mxu0 0.0
        %821 = vmatprep.subr.mxu0 0.0
        %822 = vmatpush1.msra.mxu0 0.0
        %823 = vmatprep.subr.mxu0 0.0
        %824 = vmatpush1.msra.mxu0 0.0
        %825 = vmatprep.subr.mxu0 0.0
        %826 = vmatpush1.msra.mxu0 0.0
        %827 = vmatprep.subr.mxu0 0.0
        %828 = vmatpush1.msra.mxu0 0.0
        %829 = vmatprep.subr.mxu0 0.0
        %830 = vmatpush1.msra.mxu0 0.0
        %831 = vmatprep.subr.mxu0 0.0
        %832 = vmatpush1.msra.mxu0 0.0
        %833 = vmatprep.subr.mxu0 0.0
        %834 = vmatpush1.msra.mxu0 0.0
        %835 = vmatprep.mubr.f32.mxu0 0.0
        %836 = vmatmul.mubr.f32.gmra.mrb[0].mxu0 %v760
        %v837 = vpop.f32.mrb[0].mxu0
        %v838 = vadd.f32 %v644, %v837
        %v839 = vpop.f32.mrb[0].mxu0
        %840 = vmatprep.mubr.f32.mxu0 0.0
        %841 = vmatmul.mubr.f32.gmra.mrb[0].mxu0 %v763
        %v842 = vpop.f32.mrb[0].mxu0
        %v843 = vadd.f32 %v649, %v842
        %v844 = vpop.f32.mrb[0].mxu0
        %845 = vmatprep.mubr.f32.mxu0 0.0
        %846 = vmatmul.mubr.f32.gmra.mrb[0].mxu0 %v766
        %v847 = vpop.f32.mrb[0].mxu0
        %v848 = vadd.f32 %v654, %v847
        %v849 = vpop.f32.mrb[0].mxu0
        %850 = vmatprep.mubr.f32.mxu0 0.0
        %851 = vmatmul.mubr.f32.gmra.mrb[0].mxu0 %v769
        %v852 = vpop.f32.mrb[0].mxu0
        %v853 = vadd.f32 %v659, %v852
        %v854 = vpop.f32.mrb[0].mxu0
        %855 = vdwg.mxu0
        %v856 = vld [vmem:[%s402] sm:$0xff]
        %v857 = vld [vmem:[%s402 + $0x8] sm:$0xff]
        %v858 = vld [vmem:[%s407] sm:$0xff]
        %v859 = vld [vmem:[%s407 + $0x8] sm:$0xff]
        %v860 = vmax.f32 %v741, 0.0
        %v861 = vmax.f32 %v746, 0.0
        %v862 = vmax.f32 %v751, 0.0
        %v863 = vmax.f32 %v756, 0.0
        %v864 = vmax.f32 %v838, 0.0
        %v865 = vmax.f32 %v843, 0.0
        %v866 = vmax.f32 %v848, 0.0
        %v867 = vmax.f32 %v853, 0.0
        %869 = vset.pattern.permute.xlu0 0
        %870 = vperm.xlu0 %869, %v858
        %v871 = vpop.permute.xlu0 %870
        %874 = vset.pattern.permute.xlu0 0
        %875 = vperm.xlu0 %874, %v859
        %v876 = vpop.permute.xlu0 %875
        %v879 = vsel %vm661, %v856, 0
        %881 = vmatprep.subr.mxu0 0.0
        %882 = vmatpush1.msra.mxu0 %v860
        %883 = vmatprep.subr.mxu0 0.0
        %884 = vmatpush1.msra.mxu0 %v861
        %885 = vmatprep.subr.mxu0 0.0
        %886 = vmatpush1.msra.mxu0 %v862
        %887 = vmatprep.subr.mxu0 0.0
        %888 = vmatpush1.msra.mxu0 %v863
        %889 = vmatprep.subr.mxu0 0.0
        %890 = vmatpush1.msra.mxu0 0.0
        %891 = vmatprep.subr.mxu0 0.0
        %892 = vmatpush1.msra.mxu0 0.0
        %893 = vmatprep.subr.mxu0 0.0
        %894 = vmatpush1.msra.mxu0 0.0
        %895 = vmatprep.subr.mxu0 0.0
        %896 = vmatpush1.msra.mxu0 0.0
        %897 = vmatprep.subr.mxu0 0.0
        %898 = vmatpush1.msra.mxu0 0.0
        %899 = vmatprep.subr.mxu0 0.0
        %900 = vmatpush1.msra.mxu0 0.0
        %901 = vmatprep.subr.mxu0 0.0
        %902 = vmatpush1.msra.mxu0 0.0
        %903 = vmatprep.subr.mxu0 0.0
        %904 = vmatpush1.msra.mxu0 0.0
        %905 = vmatprep.subr.mxu0 0.0
        %906 = vmatpush1.msra.mxu0 0.0
        %907 = vmatprep.subr.mxu0 0.0
        %908 = vmatpush1.msra.mxu0 0.0
        %909 = vmatprep.subr.mxu0 0.0
        %910 = vmatpush1.msra.mxu0 0.0
        %911 = vmatprep.subr.mxu0 0.0
        %912 = vmatpush1.msra.mxu0 0.0
        %913 = vmatprep.subr.mxu0 0.0
        %914 = vmatpush1.msra.mxu0 0.0
        %915 = vmatprep.subr.mxu0 0.0
        %916 = vmatpush1.msra.mxu0 0.0
        %917 = vmatprep.subr.mxu0 0.0
        %918 = vmatpush1.msra.mxu0 0.0
        %919 = vmatprep.subr.mxu0 0.0
        %920 = vmatpush1.msra.mxu0 0.0
        %921 = vmatprep.subr.mxu0 0.0
        %922 = vmatpush1.msra.mxu0 0.0
        %923 = vmatprep.subr.mxu0 0.0
        %924 = vmatpush1.msra.mxu0 0.0
        %925 = vmatprep.subr.mxu0 0.0
        %926 = vmatpush1.msra.mxu0 0.0
        %927 = vmatprep.subr.mxu0 0.0
        %928 = vmatpush1.msra.mxu0 0.0
        %929 = vmatprep.subr.mxu0 0.0
        %930 = vmatpush1.msra.mxu0 0.0
        %931 = vmatprep.subr.mxu0 0.0
        %932 = vmatpush1.msra.mxu0 0.0
        %933 = vmatprep.subr.mxu0 0.0
        %934 = vmatpush1.msra.mxu0 0.0
        %935 = vmatprep.subr.mxu0 0.0
        %936 = vmatpush1.msra.mxu0 0.0
        %937 = vmatprep.subr.mxu0 0.0
        %938 = vmatpush1.msra.mxu0 0.0
        %939 = vmatprep.subr.mxu0 0.0
        %940 = vmatpush1.msra.mxu0 0.0
        %941 = vmatprep.subr.mxu0 0.0
        %942 = vmatpush1.msra.mxu0 0.0
        %943 = vmatprep.subr.mxu0 0.0
        %944 = vmatpush1.msra.mxu0 0.0
        %945 = vmatprep.mubr.f32.mxu0 0.0
        %946 = vmatmul.mubr.f32.gmra.mrb[0].mxu0 %v879
        %v947 = vpop.f32.mrb[0].mxu0
        %v948 = vadd.f32 %v871, %v947
        %v949 = vpop.f32.mrb[0].mxu0
        %950 = vdwg.mxu0
        %v952 = vsel %vm661, %v857, 0
        %954 = vmatprep.subr.mxu0 0.0
        %955 = vmatpush1.msra.mxu0 %v864
        %956 = vmatprep.subr.mxu0 0.0
        %957 = vmatpush1.msra.mxu0 %v865
        %958 = vmatprep.subr.mxu0 0.0
        %959 = vmatpush1.msra.mxu0 %v866
        %960 = vmatprep.subr.mxu0 0.0
        %961 = vmatpush1.msra.mxu0 %v867
        %962 = vmatprep.subr.mxu0 0.0
        %963 = vmatpush1.msra.mxu0 0.0
        %964 = vmatprep.subr.mxu0 0.0
        %965 = vmatpush1.msra.mxu0 0.0
        %966 = vmatprep.subr.mxu0 0.0
        %967 = vmatpush1.msra.mxu0 0.0
        %968 = vmatprep.subr.mxu0 0.0
        %969 = vmatpush1.msra.mxu0 0.0
        %970 = vmatprep.subr.mxu0 0.0
        %971 = vmatpush1.msra.mxu0 0.0
        %972 = vmatprep.subr.mxu0 0.0
        %973 = vmatpush1.msra.mxu0 0.0
        %974 = vmatprep.subr.mxu0 0.0
        %975 = vmatpush1.msra.mxu0 0.0
        %976 = vmatprep.subr.mxu0 0.0
        %977 = vmatpush1.msra.mxu0 0.0
        %978 = vmatprep.subr.mxu0 0.0
        %979 = vmatpush1.msra.mxu0 0.0
        %980 = vmatprep.subr.mxu0 0.0
        %981 = vmatpush1.msra.mxu0 0.0
        %982 = vmatprep.subr.mxu0 0.0
        %983 = vmatpush1.msra.mxu0 0.0
        %984 = vmatprep.subr.mxu0 0.0
        %985 = vmatpush1.msra.mxu0 0.0
        %986 = vmatprep.subr.mxu0 0.0
        %987 = vmatpush1.msra.mxu0 0.0
        %988 = vmatprep.subr.mxu0 0.0
        %989 = vmatpush1.msra.mxu0 0.0
        %990 = vmatprep.subr.mxu0 0.0
        %991 = vmatpush1.msra.mxu0 0.0
        %992 = vmatprep.subr.mxu0 0.0
        %993 = vmatpush1.msra.mxu0 0.0
        %994 = vmatprep.subr.mxu0 0.0
        %995 = vmatpush1.msra.mxu0 0.0
        %996 = vmatprep.subr.mxu0 0.0
        %997 = vmatpush1.msra.mxu0 0.0
        %998 = vmatprep.subr.mxu0 0.0
        %999 = vmatpush1.msra.mxu0 0.0
        %1000 = vmatprep.subr.mxu0 0.0
        %1001 = vmatpush1.msra.mxu0 0.0
        %1002 = vmatprep.subr.mxu0 0.0
        %1003 = vmatpush1.msra.mxu0 0.0
        %1004 = vmatprep.subr.mxu0 0.0
        %1005 = vmatpush1.msra.mxu0 0.0
        %1006 = vmatprep.subr.mxu0 0.0
        %1007 = vmatpush1.msra.mxu0 0.0
        %1008 = vmatprep.subr.mxu0 0.0
        %1009 = vmatpush1.msra.mxu0 0.0
        %1010 = vmatprep.subr.mxu0 0.0
        %1011 = vmatpush1.msra.mxu0 0.0
        %1012 = vmatprep.subr.mxu0 0.0
        %1013 = vmatpush1.msra.mxu0 0.0
        %1014 = vmatprep.subr.mxu0 0.0
        %1015 = vmatpush1.msra.mxu0 0.0
        %1016 = vmatprep.subr.mxu0 0.0
        %1017 = vmatpush1.msra.mxu0 0.0
        %1018 = vmatprep.mubr.f32.mxu0 0.0
        %1019 = vmatmul.mubr.f32.gmra.mrb[0].mxu0 %v952
        %v1020 = vpop.f32.mrb[0].mxu0
        %v1021 = vadd.f32 %v876, %v1020
        %v1022 = vpop.f32.mrb[0].mxu0
        %1023 = vdwg.mxu0
        %1024 = vst [vmem:[%s373] sm:$0xff] %v948
        %1025 = vst [vmem:[%s373 + $0x8] sm:$0xff] %v1021
        %s1026 = sand.u32 %s225, 1
        %s1027 = scalar_lea.sflag [#allocation3], %s1026
        %s1028 = sand.u32 %s225, 1
        %s1029 = smul.addr %s1028, 16
        %s1030 = scalar_lea.vmem [#allocation2], %s1029
        // Predicated region
        $region49: #{tpu_custom_call.1} parent=47 // pred_check
          %p1031 = pneg %p235
        $region50: #{tpu_custom_call.1} parent=47 // pred_check_branch
          %1033 = sbr.rel (%p1031) target = $region52
        $region51: #{tpu_custom_call.1} parent=47 // pred_region
          %s1035 = ssub.s32 256, 256
          %1036 = vsyncadd %s1027, %s1035
          %s1037 = smul.addr %s25, 2
          %s1038 = sadd.s32 %s26, %s1037
          %s1039 = smul.addr %s1038, 128
          %s1040 = scalar_lea.hbm %s7, %s1039
          %s1041 = sshll.u32 %s1030, 4
          %s1042 = int_to_ptr.vmem [resolvable:$true] %s1041
          %1047 = dma.vmem_to_hbm [thread:$0]  %s1042, 256, %s1040, %s1027, 128, 128, 8
        $region52: #{tpu_custom_call.1} parent=47 // pred_fallthru
          _
      $region48: #{tpu_custom_call.1} parent=5 // pred_fallthru
        _
      %p1048 = scmp.le.s32.totalorder 2, %s16
      // Predicated region
      $region53: #{tpu_custom_call.1} parent=5 // pred_check
        %p1049 = pneg %p1048
      $region54: #{tpu_custom_call.1} parent=5 // pred_check_branch
        %1051 = sbr.rel (%p1049) target = $region56
      $region55: #{tpu_custom_call.1} parent=5 // pred_region
        %s1052 = ssub.s32 %s16, 2
        // Predicated region
        $region57: #{tpu_custom_call.1} parent=55 // pred_check
          %p1053 = pneg %p241
        $region58: #{tpu_custom_call.1} parent=55 // pred_check_branch
          %1055 = sbr.rel (%p1053) target = $region60
        $region59: #{tpu_custom_call.1} parent=55 // pred_region
          %s1056 = sand.u32 %s226, 1
          %s1057 = scalar_lea.sflag [#allocation3], %s1056
          %s1058 = sand.u32 %s226, 1
          %s1059 = smul.addr %s1058, 16
          %s1060 = scalar_lea.vmem [#allocation2], %s1059
          %1061 = dma.done %s1057, 256
        $region60: #{tpu_custom_call.1} parent=55 // pred_fallthru
          _
      $region56: #{tpu_custom_call.1} parent=5 // pred_fallthru
        _
    $region6: #{tpu_custom_call.1} parent=1 // loop_footer
      %s20 = sadd.s32 1, %s16
    $region7: #{tpu_custom_call.1} parent=1 // loop_footer_branch
      %15 = sbr.rel target = $region3
    $region8: #{tpu_custom_call.1} parent=1 // loop_exit
      _
    %1062 = vsyncpa [#allocation3], 1
    %s1063 = scalar_lea.sflag [#allocation3], 1
    %1064 = vsyncpa %s1063, 1

</llo_original>
